<compile_context>
chip_gen: v7x
topology: tpu7x:2x2x1
jax: 0.10.0
libtpu: 0.0.40
codegen_flags: <defaults>
</compile_context>

<pallas_src>
import functools

import jax
import jax.numpy as jnp
from jax.experimental import pallas as pl
from jax.experimental.pallas import tpu as pltpu


def _act(x, name):
    if name == "relu":
        return jnp.maximum(x, 0.0)
    elif name == "tanh":
        return jnp.tanh(x)
    elif name == "leakyrelu":
        return jnp.where(x > 0, x, 0.01 * x)
    else:
        raise ValueError("Unavailable activation.")


def temporal_block_kernel(x_ref, w1_ref, b1_ref, w2_ref, b2_ref, wd_ref, bd_ref,
                          o_ref, xwin_ref, hwin_ref, *, k, dilation, pad, TL,
                          activation, has_downsample, multi_tile):
    """Grid = (batch, time_tiles). Channels on sublanes, time on lanes.

    x_ref   : (1, Cin, TL)     current time tile (native NCL layout)
    w1_ref  : (Cout, k*Cin)    merged-tap weight-normalized conv1 weights
    w2_ref  : (Cout, k*Cout)   merged-tap conv2 weights
    wd_ref  : (Cout, Cin)      1x1 downsample weights (unused if not needed)
    o_ref   : (1, Cout, TL)
    xwin_ref: (Cin,  TL+pad)   causal sliding window of x (carried across tiles)
    hwin_ref: (Cout, TL+pad)   causal sliding window of act(conv1)
    """
    t = pl.program_id(1)

    if pad > 0:
        @pl.when(t == 0)
        def _():
            # only the causal-pad region needs zeroing; the rest is overwritten
            xwin_ref[:, :pad] = jnp.zeros((xwin_ref.shape[0], pad), xwin_ref.dtype)
            hwin_ref[:, :pad] = jnp.zeros((hwin_ref.shape[0], pad), hwin_ref.dtype)

    x_tile = x_ref[0]                                      # (Cin, TL)
    xwin_ref[:, pl.ds(pad, TL)] = x_tile

    def stacked(win_ref):
        # stack the k dilated taps along sublanes -> (k*C, TL)
        if k == 1:
            return win_ref[:, pl.ds(0, TL)]
        return jnp.concatenate(
            [win_ref[:, pl.ds(j * dilation, TL)] for j in range(k)], axis=0)

    # ---- conv1 (causal, dilated): one merged-tap MXU matmul + activation ----
    h1 = jnp.dot(w1_ref[...], stacked(xwin_ref),
                 preferred_element_type=jnp.float32) + b1_ref[...]
    hwin_ref[:, pl.ds(pad, TL)] = _act(h1, activation)

    # ---- conv2 (causal, dilated) + activation ----
    h2 = jnp.dot(w2_ref[...], stacked(hwin_ref),
                 preferred_element_type=jnp.float32) + b2_ref[...]
    out = _act(h2, activation)

    # ---- residual path ----
    if has_downsample:
        res = jnp.dot(wd_ref[...], x_tile,
                      preferred_element_type=jnp.float32) + bd_ref[...]
    else:
        res = x_tile.astype(jnp.float32)

    o_ref[0] = _act(out + res, activation).astype(o_ref.dtype)

    # carry the last `pad` columns into the next time tile of the same sequence
    if multi_tile and pad > 0:
        xwin_ref[:, :pad] = xwin_ref[:, pl.ds(TL, pad)]
        hwin_ref[:, :pad] = hwin_ref[:, pl.ds(TL, pad)]


def weight_norm(v, g):
    # PyTorch weight_norm (dim=0): w = g * v / ||v||, norm over all dims but 0.
    norm = jnp.sqrt(jnp.sum(v * v, axis=(1, 2), keepdims=True))
    return v * (g[:, None, None] / norm)


def _choose_time_tile(L, pad, target=512):
    if L <= target:
        return L
    t = (target // 128) * 128
    while t >= 128:
        if L % t == 0 and t >= pad:
            return t
        t -= 128
    return L


def temporal_block_forward(x, params, *, kernel_size, stride, dilation, padding,
                           activation="relu", time_tile=None):
    """x: (B, Cin, L) — PyTorch NCL in, NCL out (no wrapper transposes)."""
    assert stride == 1, "TCN TemporalBlock uses stride=1"
    assert padding == dilation * (kernel_size - 1), \
        "conv(pad) + chomp(pad) preserves length only for causal padding"

    B, Cin, L = x.shape
    k = kernel_size
    w1 = weight_norm(params["v1"], params["g1"])           # (Cout, Cin, k)
    w2 = weight_norm(params["v2"], params["g2"])           # (Cout, Cout, k)
    Cout = w1.shape[0]
    has_downsample = Cin != Cout

    # merged-tap weight layout: column j*C + c  <->  (tap j, channel c)
    w1_flat = jnp.transpose(w1, (0, 2, 1)).reshape(Cout, k * Cin)
    w2_flat = jnp.transpose(w2, (0, 2, 1)).reshape(Cout, k * Cout)
    b1 = params["b1"].reshape(Cout, 1)
    b2 = params["b2"].reshape(Cout, 1)
    if has_downsample:
        wd = params["wd"][:, :, 0]                         # (Cout, Cin)
        bd = params["bd"].reshape(Cout, 1)
    else:
        wd = jnp.zeros((Cout, Cin), x.dtype)
        bd = jnp.zeros((Cout, 1), x.dtype)

    TL = time_tile if time_tile is not None else _choose_time_tile(L, padding)
    assert L % TL == 0 and (TL >= padding or L == TL)
    n_t = L // TL

    kern = functools.partial(
        temporal_block_kernel, k=k, dilation=dilation, pad=padding, TL=TL,
        activation=activation, has_downsample=has_downsample,
        multi_tile=n_t > 1)

    # explicit VMEM budget from the chosen tiles (double-buffered I/O + scratch)
    esz = jnp.dtype(x.dtype).itemsize
    vmem_bytes = 2 * (2 * Cin * TL * esz + 2 * Cout * TL * esz
                      + (Cin * esz + Cout * 4) * (TL + padding)
                      + 4 * Cout * (k * Cin + k * Cout + Cin + 3)) + (2 << 20)
    vmem_bytes = int(min(max(vmem_bytes, 16 << 20), 32 << 20))

    out = pl.pallas_call(
        kern,
        out_shape=jax.ShapeDtypeStruct((B, Cout, L), x.dtype),
        grid_spec=pltpu.PrefetchScalarGridSpec(
            num_scalar_prefetch=0,
            grid=(B, n_t),
            in_specs=[
                pl.BlockSpec((1, Cin, TL), lambda b, t: (b, 0, t)),
                pl.BlockSpec((Cout, k * Cin), lambda b, t: (0, 0)),
                pl.BlockSpec((Cout, 1), lambda b, t: (0, 0)),
                pl.BlockSpec((Cout, k * Cout), lambda b, t: (0, 0)),
                pl.BlockSpec((Cout, 1), lambda b, t: (0, 0)),
                pl.BlockSpec((Cout, Cin), lambda b, t: (0, 0)),
                pl.BlockSpec((Cout, 1), lambda b, t: (0, 0)),
            ],
            out_specs=pl.BlockSpec((1, Cout, TL), lambda b, t: (b, 0, t)),
            scratch_shapes=[
                pltpu.VMEM((Cin, TL + padding), x.dtype),
                pltpu.VMEM((Cout, TL + padding), jnp.float32),
            ],
        ),
        compiler_params=pltpu.CompilerParams(
            dimension_semantics=("parallel", "arbitrary"),
            vmem_limit_bytes=vmem_bytes),
    )(x, w1_flat, b1, w2_flat, b2, wd, bd)

    return out


# ---------------- pure-JAX reference (mirrors the PyTorch forward) ----------
def reference_forward(x, params, *, kernel_size, stride, dilation, padding,
                      activation="relu"):
    def conv1d(x, w, b, dil, pad):
        out = jax.lax.conv_general_dilated(
            x, w, window_strides=(stride,), padding=[(pad, pad)],
            rhs_dilation=(dil,), dimension_numbers=("NCH", "OIH", "NCH"))
        return out + b[None, :, None]

    w1 = weight_norm(params["v1"], params["g1"])
    w2 = weight_norm(params["v2"], params["g2"])
    Cin, Cout = x.shape[1], w1.shape[0]

    o = conv1d(x, w1, params["b1"], dilation, padding)[:, :, :-padding]  # chomp1
    o = _act(o, activation)                                              # dropout1 = id
    o = conv1d(o, w2, params["b2"], dilation, padding)[:, :, :-padding]  # chomp2
    o = _act(o, activation)                                              # dropout2 = id
    if Cin != Cout:
        res = conv1d(x, params["wd"], params["bd"], 1, 0)
    else:
        res = x
    return _act(o + res, activation)


if __name__ == "__main__":
    def run_case(name, B, Cin, Cout, L, kernel_size, dilation, activation,
                 time_tile=None, seed=0):
        padding = (kernel_size - 1) * dilation
        key = jax.random.PRNGKey(seed)
        k1, k2, k3, k4, k5, k6, kx = jax.random.split(key, 7)
        # weight_norm params: v ~ N(0, 0.01); g initialized to ||v|| (w == v)
        v1 = 0.01 * jax.random.normal(k1, (Cout, Cin, kernel_size), jnp.float32)
        v2 = 0.01 * jax.random.normal(k2, (Cout, Cout, kernel_size), jnp.float32)
        params = {
            "v1": v1, "g1": jnp.sqrt(jnp.sum(v1 * v1, axis=(1, 2))),
            "b1": 0.05 * jax.random.normal(k3, (Cout,), jnp.float32),
            "v2": v2, "g2": jnp.sqrt(jnp.sum(v2 * v2, axis=(1, 2))),
            "b2": 0.05 * jax.random.normal(k4, (Cout,), jnp.float32),
            "wd": 0.01 * jax.random.normal(k5, (Cout, Cin, 1), jnp.float32),
            "bd": 0.05 * jax.random.normal(k6, (Cout,), jnp.float32),
        }
        x = jax.random.normal(kx, (B, Cin, L), jnp.float32)

        out = temporal_block_forward(
            x, params, kernel_size=kernel_size, stride=1, dilation=dilation,
            padding=padding, activation=activation, time_tile=time_tile)
        out = jax.block_until_ready(out)
        ref = reference_forward(
            x, params, kernel_size=kernel_size, stride=1, dilation=dilation,
            padding=padding, activation=activation)
        assert out.shape == (B, Cout, L), (name, out.shape)
        err = float(jnp.max(jnp.abs(out - ref)))
        assert jnp.allclose(out, ref, rtol=1e-5, atol=1e-5), (name, err)

    # 1) downsample residual path, single time tile
    run_case("downsample", B=2, Cin=4, Cout=8, L=16, kernel_size=3, dilation=2,
             activation="relu", seed=0)
    # 2) identity residual + multi-tile causal carry (forced 128-wide tiles)
    run_case("carry", B=2, Cin=8, Cout=8, L=256, kernel_size=3, dilation=4,
             activation="tanh", time_tile=128, seed=1)

    print("KERNEL_OK")
</pallas_src>

<mosaic_0001>
module attributes {stable_mosaic.version = 11 : i64} {
  func.func @temporal_block_kernel(%arg0: i32, %arg1: i32, %arg2: memref<1x4x16xf32, #tpu.memory_space<vmem>>, %arg3: memref<8x12xf32, #tpu.memory_space<vmem>>, %arg4: memref<8x1xf32, #tpu.memory_space<vmem>>, %arg5: memref<8x24xf32, #tpu.memory_space<vmem>>, %arg6: memref<8x1xf32, #tpu.memory_space<vmem>>, %arg7: memref<8x4xf32, #tpu.memory_space<vmem>>, %arg8: memref<8x1xf32, #tpu.memory_space<vmem>>, %arg9: memref<1x8x16xf32, #tpu.memory_space<vmem>>, %arg10: memref<4x20xf32, #tpu.memory_space<vmem>>, %arg11: memref<8x20xf32, #tpu.memory_space<vmem>>) attributes {dimension_semantics = [#tpu.dimension_semantics<parallel>, #tpu.dimension_semantics<arbitrary>], iteration_bounds = array<i64: 2, 1>, scalar_prefetch = 0 : i64, scratch_operands = 2 : i64, tpu.core_type = #tpu.core_type<tc>, window_params = [{transform_indices = @transform_0, window_bounds = array<i64: 1, 4, 16>}, {pipeline_mode = #tpu.pipeline_mode<synchronous>, transform_indices = @transform_1, window_bounds = array<i64: 8, 12>}, {pipeline_mode = #tpu.pipeline_mode<synchronous>, transform_indices = @transform_2, window_bounds = array<i64: 8, 1>}, {pipeline_mode = #tpu.pipeline_mode<synchronous>, transform_indices = @transform_3, window_bounds = array<i64: 8, 24>}, {pipeline_mode = #tpu.pipeline_mode<synchronous>, transform_indices = @transform_4, window_bounds = array<i64: 8, 1>}, {pipeline_mode = #tpu.pipeline_mode<synchronous>, transform_indices = @transform_5, window_bounds = array<i64: 8, 4>}, {pipeline_mode = #tpu.pipeline_mode<synchronous>, transform_indices = @transform_6, window_bounds = array<i64: 8, 1>}, {transform_indices = @transform_7, window_bounds = array<i64: 1, 8, 16>}]} {
    %c0_i32 = arith.constant 0 : i32
    %0 = arith.cmpi eq, %arg1, %c0_i32 : i32
    %1 = arith.extui %0 : i1 to i32
    %c0_i32_0 = arith.constant 0 : i32
    %2 = arith.cmpi ne, %1, %c0_i32_0 : i32
    scf.if %2 {
      %cst_37 = arith.constant 0.000000e+00 : f32
      %40 = vector.broadcast %cst_37 : f32 to vector<4x4xf32>
      %c0_38 = arith.constant 0 : index
      %c0_39 = arith.constant 0 : index
      %41 = vector.load %arg10[%c0_38, %c0_39] : memref<4x20xf32, #tpu.memory_space<vmem>>, vector<4x4xf32>
      tpu.vector_store %arg10[%c0_38, %c0_39], %40 {strides = array<i32>} : memref<4x20xf32, #tpu.memory_space<vmem>>, vector<4x4xf32>,
      %cst_40 = arith.constant 0.000000e+00 : f32
      %42 = vector.broadcast %cst_40 : f32 to vector<8x4xf32>
      %c0_41 = arith.constant 0 : index
      %c0_42 = arith.constant 0 : index
      %43 = vector.load %arg11[%c0_41, %c0_42] : memref<8x20xf32, #tpu.memory_space<vmem>>, vector<8x4xf32>
      tpu.vector_store %arg11[%c0_41, %c0_42], %42 {strides = array<i32>} : memref<8x20xf32, #tpu.memory_space<vmem>>, vector<8x4xf32>,
    } else {
    }
    %c0 = arith.constant 0 : index
    %c0_1 = arith.constant 0 : index
    %c0_2 = arith.constant 0 : index
    %3 = vector.load %arg2[%c0, %c0_1, %c0_2] : memref<1x4x16xf32, #tpu.memory_space<vmem>>, vector<1x4x16xf32>
    %4 = vector.shape_cast %3 : vector<1x4x16xf32> to vector<4x16xf32>
    %c0_3 = arith.constant 0 : index
    %c4 = arith.constant 4 : index
    %5 = vector.load %arg10[%c0_3, %c4] : memref<4x20xf32, #tpu.memory_space<vmem>>, vector<4x16xf32>
    tpu.vector_store %arg10[%c0_3, %c4], %4 {strides = array<i32>} : memref<4x20xf32, #tpu.memory_space<vmem>>, vector<4x16xf32>,
    %c0_4 = arith.constant 0 : index
    %c0_5 = arith.constant 0 : index
    %6 = vector.load %arg3[%c0_4, %c0_5] : memref<8x12xf32, #tpu.memory_space<vmem>>, vector<8x12xf32>
    %c0_6 = arith.constant 0 : index
    %c0_7 = arith.constant 0 : index
    %7 = vector.load %arg10[%c0_6, %c0_7] : memref<4x20xf32, #tpu.memory_space<vmem>>, vector<4x16xf32>
    %c0_8 = arith.constant 0 : index
    %c2 = arith.constant 2 : index
    %8 = vector.load %arg10[%c0_8, %c2] : memref<4x20xf32, #tpu.memory_space<vmem>>, vector<4x16xf32>
    %c0_9 = arith.constant 0 : index
    %c4_10 = arith.constant 4 : index
    %9 = vector.load %arg10[%c0_9, %c4_10] : memref<4x20xf32, #tpu.memory_space<vmem>>, vector<4x16xf32>
    %10 = tpu.concatenate %7, %8, %9 in 0 : vector<4x16xf32>, vector<4x16xf32>, vector<4x16xf32> -> vector<12x16xf32>
    %cst = arith.constant dense<0.000000e+00> : vector<8x16xf32>
    %11 = tpu.matmul %6, %10, %cst {dimension_numbers = #tpu.dot_dimension_numbers<[1], [0], [0], [1], [0, 0, 1, 1], [], []>} : vector<8x12xf32>, vector<12x16xf32>, vector<8x16xf32> -> vector<8x16xf32>
    %c0_11 = arith.constant 0 : index
    %c0_12 = arith.constant 0 : index
    %12 = vector.load %arg4[%c0_11, %c0_12] : memref<8x1xf32, #tpu.memory_space<vmem>>, vector<8x1xf32>
    %13 = vector.broadcast %12 : vector<8x1xf32> to vector<8x16xf32>
    %14 = arith.addf %11, %13 : vector<8x16xf32>
    %cst_13 = arith.constant 0.000000e+00 : f32
    %15 = vector.broadcast %cst_13 : f32 to vector<8x16xf32>
    %16 = arith.maximumf %14, %15 : vector<8x16xf32>
    %c0_14 = arith.constant 0 : index
    %c4_15 = arith.constant 4 : index
    %17 = vector.load %arg11[%c0_14, %c4_15] : memref<8x20xf32, #tpu.memory_space<vmem>>, vector<8x16xf32>
    tpu.vector_store %arg11[%c0_14, %c4_15], %16 {strides = array<i32>} : memref<8x20xf32, #tpu.memory_space<vmem>>, vector<8x16xf32>,
    %c0_16 = arith.constant 0 : index
    %c0_17 = arith.constant 0 : index
    %18 = vector.load %arg5[%c0_16, %c0_17] : memref<8x24xf32, #tpu.memory_space<vmem>>, vector<8x24xf32>
    %c0_18 = arith.constant 0 : index
    %c0_19 = arith.constant 0 : index
    %19 = vector.load %arg11[%c0_18, %c0_19] : memref<8x20xf32, #tpu.memory_space<vmem>>, vector<8x16xf32>
    %c0_20 = arith.constant 0 : index
    %c2_21 = arith.constant 2 : index
    %20 = vector.load %arg11[%c0_20, %c2_21] : memref<8x20xf32, #tpu.memory_space<vmem>>, vector<8x16xf32>
    %c0_22 = arith.constant 0 : index
    %c4_23 = arith.constant 4 : index
    %21 = vector.load %arg11[%c0_22, %c4_23] : memref<8x20xf32, #tpu.memory_space<vmem>>, vector<8x16xf32>
    %22 = tpu.concatenate %19, %20, %21 in 0 : vector<8x16xf32>, vector<8x16xf32>, vector<8x16xf32> -> vector<24x16xf32>
    %cst_24 = arith.constant dense<0.000000e+00> : vector<8x16xf32>
    %23 = tpu.matmul %18, %22, %cst_24 {dimension_numbers = #tpu.dot_dimension_numbers<[1], [0], [0], [1], [0, 0, 1, 1], [], []>} : vector<8x24xf32>, vector<24x16xf32>, vector<8x16xf32> -> vector<8x16xf32>
    %c0_25 = arith.constant 0 : index
    %c0_26 = arith.constant 0 : index
    %24 = vector.load %arg6[%c0_25, %c0_26] : memref<8x1xf32, #tpu.memory_space<vmem>>, vector<8x1xf32>
    %25 = vector.broadcast %24 : vector<8x1xf32> to vector<8x16xf32>
    %26 = arith.addf %23, %25 : vector<8x16xf32>
    %cst_27 = arith.constant 0.000000e+00 : f32
    %27 = vector.broadcast %cst_27 : f32 to vector<8x16xf32>
    %28 = arith.maximumf %26, %27 : vector<8x16xf32>
    %c0_28 = arith.constant 0 : index
    %c0_29 = arith.constant 0 : index
    %29 = vector.load %arg7[%c0_28, %c0_29] : memref<8x4xf32, #tpu.memory_space<vmem>>, vector<8x4xf32>
    %cst_30 = arith.constant dense<0.000000e+00> : vector<8x16xf32>
    %30 = tpu.matmul %29, %4, %cst_30 {dimension_numbers = #tpu.dot_dimension_numbers<[1], [0], [0], [1], [0, 0, 1, 1], [], []>} : vector<8x4xf32>, vector<4x16xf32>, vector<8x16xf32> -> vector<8x16xf32>
    %c0_31 = arith.constant 0 : index
    %c0_32 = arith.constant 0 : index
    %31 = vector.load %arg8[%c0_31, %c0_32] : memref<8x1xf32, #tpu.memory_space<vmem>>, vector<8x1xf32>
    %32 = vector.broadcast %31 : vector<8x1xf32> to vector<8x16xf32>
    %33 = arith.addf %30, %32 : vector<8x16xf32>
    %34 = arith.addf %28, %33 : vector<8x16xf32>
    %cst_33 = arith.constant 0.000000e+00 : f32
    %35 = vector.broadcast %cst_33 : f32 to vector<8x16xf32>
    %36 = arith.maximumf %34, %35 : vector<8x16xf32>
    %c0_34 = arith.constant 0 : index
    %c0_35 = arith.constant 0 : index
    %c0_36 = arith.constant 0 : index
    %37 = vector.load %arg9[%c0_34, %c0_35, %c0_36] : memref<1x8x16xf32, #tpu.memory_space<vmem>>, vector<1x8x16xf32>
    %38 = vector.shape_cast %37 : vector<1x8x16xf32> to vector<8x16xf32>
    %39 = vector.shape_cast %36 : vector<8x16xf32> to vector<1x8x16xf32>
    tpu.vector_store %arg9[%c0_34, %c0_35, %c0_36], %39 {strides = array<i32>} : memref<1x8x16xf32, #tpu.memory_space<vmem>>, vector<1x8x16xf32>,
    return
  }
  func.func @transform_0(%arg0: i32, %arg1: i32) -> (i32, i32, i32) {
    %c0_i32 = arith.constant 0 : i32
    %c0_i32_0 = arith.constant 0 : i32
    return %arg0, %c0_i32, %arg1 : i32, i32, i32
  }
  func.func @transform_1(%arg0: i32, %arg1: i32) -> (i32, i32) {
    %c0_i32 = arith.constant 0 : i32
    %c0_i32_0 = arith.constant 0 : i32
    %c0_i32_1 = arith.constant 0 : i32
    return %c0_i32, %c0_i32_0 : i32, i32
  }
  func.func @transform_2(%arg0: i32, %arg1: i32) -> (i32, i32) {
    %c0_i32 = arith.constant 0 : i32
    %c0_i32_0 = arith.constant 0 : i32
    %c0_i32_1 = arith.constant 0 : i32
    return %c0_i32, %c0_i32_0 : i32, i32
  }
  func.func @transform_3(%arg0: i32, %arg1: i32) -> (i32, i32) {
    %c0_i32 = arith.constant 0 : i32
    %c0_i32_0 = arith.constant 0 : i32
    %c0_i32_1 = arith.constant 0 : i32
    return %c0_i32, %c0_i32_0 : i32, i32
  }
  func.func @transform_4(%arg0: i32, %arg1: i32) -> (i32, i32) {
    %c0_i32 = arith.constant 0 : i32
    %c0_i32_0 = arith.constant 0 : i32
    %c0_i32_1 = arith.constant 0 : i32
    return %c0_i32, %c0_i32_0 : i32, i32
  }
  func.func @transform_5(%arg0: i32, %arg1: i32) -> (i32, i32) {
    %c0_i32 = arith.constant 0 : i32
    %c0_i32_0 = arith.constant 0 : i32
    %c0_i32_1 = arith.constant 0 : i32
    return %c0_i32, %c0_i32_0 : i32, i32
  }
  func.func @transform_6(%arg0: i32, %arg1: i32) -> (i32, i32) {
    %c0_i32 = arith.constant 0 : i32
    %c0_i32_0 = arith.constant 0 : i32
    %c0_i32_1 = arith.constant 0 : i32
    return %c0_i32, %c0_i32_0 : i32, i32
  }
  func.func @transform_7(%arg0: i32, %arg1: i32) -> (i32, i32, i32) {
    %c0_i32 = arith.constant 0 : i32
    %c0_i32_0 = arith.constant 0 : i32
    return %arg0, %c0_i32, %arg1 : i32, i32, i32
  }
}

</mosaic_0001>

<llo_original>
// kernel: tpu_custom_call.1
$region0: #{tpu_custom_call.1}
  #allocation0 [shape = 'u32[]', space=smem, size = 0x4, offset = 0x4, fixed_abs, tag = 'smem constant byte address 0x4 - core index']
  #allocation1 [shape = 'u32[144,128]{1,0:T(1,128)}', space=vmem, size = 0x12000, scoped, tag = 'internal scratch']
  #allocation2 [shape = 'f32[4,20]{1,0:T(4,128)}', space=vmem, size = 0x800, scoped, tag = 'scratch operand']
  #allocation3 [shape = 'f32[8,20]{1,0:T(8,128)}', space=vmem, size = 0x1000, scoped, tag = 'scratch operand']
  %s0 = inlined_call_operand.vmem [shape: f32[2,4,16], index: 0, kind: input, shape index: {}]
  %s1 = inlined_call_operand.vmem [shape: f32[8,12], index: 1, kind: input, shape index: {}]
  %s2 = inlined_call_operand.vmem [shape: f32[8,1], index: 2, kind: input, shape index: {}]
  %s3 = inlined_call_operand.vmem [shape: f32[8,24], index: 3, kind: input, shape index: {}]
  %s4 = inlined_call_operand.vmem [shape: f32[8,1], index: 4, kind: input, shape index: {}]
  %s5 = inlined_call_operand.vmem [shape: f32[8,4], index: 5, kind: input, shape index: {}]
  %s6 = inlined_call_operand.vmem [shape: f32[8,1], index: 6, kind: input, shape index: {}]
  %s7 = inlined_call_operand.hbm [shape: f32[2,8,16], index: 7, kind: output, shape index: {}]
  %s8 = sld [smem:[#allocation0]]
  $region65: #{tpu_custom_call.1} parent=0
    _
  %s10 = ssub.s32 1, %s8
  %s11 = scalar_select 0, %s10, %s8
  $region1: #{tpu_custom_call.1} parent=0
    #allocation4 [shape = 'u8[8192]{0}', space=vmem, size = 0x2000, scoped, tag = 'output window, operand 0']
    #allocation5 [shape = 's32[2]{0}', space=sflag, size = 0x8, scoped, tag = 'scoped memory for tpu_custom_call.1']
    %12 = vsyncpa [#allocation5], 0
    %s13 = scalar_lea.sflag [#allocation5], 1
    %14 = vsyncpa %s13, 0
    loop: start=0, step=1, limit=4
    $region2: #{tpu_custom_call.1} parent=1 // loop_pre_header
      _
    $region3: #{tpu_custom_call.1} parent=1 // loop_header
      %s16 = sphi 0, %s20
      %p17 = scmp.ge.s32.totalorder %s16, 4
      %s23 = sphi 0, %s35
      %s24 = sphi 0, %s31
      %s25 = sphi 0, %s23
      %s26 = sphi 0, %s24
      %s27 = sphi 0, %s25
      %s28 = sphi 0, %s26
      %s40 = sphi 0, %s42
      %s43 = sphi 0, %s40
      %s44 = sphi 0, %s43
      %s60 = sphi 0, %s44
      %s64 = sphi 0, %s64
      %s66 = sphi 0, %s64
      %s67 = sphi 0, %s66
      %s81 = sphi 0, %s67
      %s85 = sphi 0, %s85
      %s87 = sphi 0, %s85
      %s88 = sphi 0, %s87
      %s102 = sphi 0, %s88
      %s106 = sphi 0, %s106
      %s108 = sphi 0, %s106
      %s109 = sphi 0, %s108
      %s123 = sphi 0, %s109
      %s127 = sphi 0, %s127
      %s129 = sphi 0, %s127
      %s130 = sphi 0, %s129
      %s144 = sphi 0, %s130
      %s148 = sphi 0, %s148
      %s150 = sphi 0, %s148
      %s151 = sphi 0, %s150
      %s165 = sphi 0, %s151
      %s169 = sphi 0, %s169
      %s171 = sphi 0, %s169
      %s172 = sphi 0, %s171
      %s186 = sphi 0, %s172
      %s194 = sphi 0, %s196
      %s197 = sphi 0, %s194
      %s198 = sphi 0, %s197
      %s214 = sphi 0, %s198
    $region4: #{tpu_custom_call.1} parent=1 // loop_header_branch
      %19 = sbr.rel (%p17) target = $region8
    $region5: #{tpu_custom_call.1} parent=1 // loop_body
      %s21 = ssub.s32 %s16, 1
      %s22 = ssub.s32 %s16, 2
      %s29 = sadd.s32 1, %s24
      %p30 = scmp.ge.s32.totalorder %s29, 1
      %s31 = scalar_select %p30, 0, %s29
      %s32 = sadd.s32 1, %s23
      %s33 = scalar_select %p30, %s32, %s23
      %p34 = scmp.ge.s32.totalorder %s33, 2
      %s35 = scalar_select %p34, 0, %s33
      %s36 = ssub.s32 %s23, %s35
      %s37 = ssub.s32 %s24, %s31
      %s38 = sor.u32 %s36, %s37
      %p39 = scmp.eq.s32.totalorder %s38, 0
      %s41 = sadd.s32 %s40, 1
      %s42 = scalar_select %p39, %s40, %s41
      %p45 = pneg %p39
      %p46 = scmp.eq.s32.totalorder %s16, 1
      %p47 = por %p45, %p46
      %p48 = scmp.ne.s32.totalorder %s40, %s43
      %p49 = scmp.eq.s32.totalorder %s16, 0
      %p50 = por %p48, %p49
      %p51 = scmp.ne.s32.totalorder %s40, %s43
      %p52 = scmp.eq.s32.totalorder %s21, 1
      %p53 = por %p51, %p52
      %p54 = scmp.ne.s32.totalorder %s43, %s44
      %p55 = scmp.eq.s32.totalorder %s21, 0
      %p56 = por %p54, %p55
      %p57 = scmp.ne.s32.totalorder %s43, %s44
      %p58 = scmp.eq.s32.totalorder %s22, 1
      %p59 = por %p57, %p58
      %p61 = scmp.ne.s32.totalorder %s44, %s60
      %p62 = scmp.eq.s32.totalorder %s22, 0
      %p63 = por %p61, %p62
      %s65 = sadd.s32 %s64, 1
      %p68 = scmp.eq.s32.totalorder %s16, 1
      %p69 = scmp.ne.s32.totalorder %s64, %s66
      %p70 = scmp.eq.s32.totalorder %s16, 0
      %p71 = por %p69, %p70
      %p72 = scmp.ne.s32.totalorder %s64, %s66
      %p73 = scmp.eq.s32.totalorder %s21, 1
      %p74 = por %p72, %p73
      %p75 = scmp.ne.s32.totalorder %s66, %s67
      %p76 = scmp.eq.s32.totalorder %s21, 0
      %p77 = por %p75, %p76
      %p78 = scmp.ne.s32.totalorder %s66, %s67
      %p79 = scmp.eq.s32.totalorder %s22, 1
      %p80 = por %p78, %p79
      %p82 = scmp.ne.s32.totalorder %s67, %s81
      %p83 = scmp.eq.s32.totalorder %s22, 0
      %p84 = por %p82, %p83
      %s86 = sadd.s32 %s85, 1
      %p89 = scmp.eq.s32.totalorder %s16, 1
      %p90 = scmp.ne.s32.totalorder %s85, %s87
      %p91 = scmp.eq.s32.totalorder %s16, 0
      %p92 = por %p90, %p91
      %p93 = scmp.ne.s32.totalorder %s85, %s87
      %p94 = scmp.eq.s32.totalorder %s21, 1
      %p95 = por %p93, %p94
      %p96 = scmp.ne.s32.totalorder %s87, %s88
      %p97 = scmp.eq.s32.totalorder %s21, 0
      %p98 = por %p96, %p97
      %p99 = scmp.ne.s32.totalorder %s87, %s88
      %p100 = scmp.eq.s32.totalorder %s22, 1
      %p101 = por %p99, %p100
      %p103 = scmp.ne.s32.totalorder %s88, %s102
      %p104 = scmp.eq.s32.totalorder %s22, 0
      %p105 = por %p103, %p104
      %s107 = sadd.s32 %s106, 1
      %p110 = scmp.eq.s32.totalorder %s16, 1
      %p111 = scmp.ne.s32.totalorder %s106, %s108
      %p112 = scmp.eq.s32.totalorder %s16, 0
      %p113 = por %p111, %p112
      %p114 = scmp.ne.s32.totalorder %s106, %s108
      %p115 = scmp.eq.s32.totalorder %s21, 1
      %p116 = por %p114, %p115
      %p117 = scmp.ne.s32.totalorder %s108, %s109
      %p118 = scmp.eq.s32.totalorder %s21, 0
      %p119 = por %p117, %p118
      %p120 = scmp.ne.s32.totalorder %s108, %s109
      %p121 = scmp.eq.s32.totalorder %s22, 1
      %p122 = por %p120, %p121
      %p124 = scmp.ne.s32.totalorder %s109, %s123
      %p125 = scmp.eq.s32.totalorder %s22, 0
      %p126 = por %p124, %p125
      %s128 = sadd.s32 %s127, 1
      %p131 = scmp.eq.s32.totalorder %s16, 1
      %p132 = scmp.ne.s32.totalorder %s127, %s129
      %p133 = scmp.eq.s32.totalorder %s16, 0
      %p134 = por %p132, %p133
      %p135 = scmp.ne.s32.totalorder %s127, %s129
      %p136 = scmp.eq.s32.totalorder %s21, 1
      %p137 = por %p135, %p136
      %p138 = scmp.ne.s32.totalorder %s129, %s130
      %p139 = scmp.eq.s32.totalorder %s21, 0
      %p140 = por %p138, %p139
      %p141 = scmp.ne.s32.totalorder %s129, %s130
      %p142 = scmp.eq.s32.totalorder %s22, 1
      %p143 = por %p141, %p142
      %p145 = scmp.ne.s32.totalorder %s130, %s144
      %p146 = scmp.eq.s32.totalorder %s22, 0
      %p147 = por %p145, %p146
      %s149 = sadd.s32 %s148, 1
      %p152 = scmp.eq.s32.totalorder %s16, 1
      %p153 = scmp.ne.s32.totalorder %s148, %s150
      %p154 = scmp.eq.s32.totalorder %s16, 0
      %p155 = por %p153, %p154
      %p156 = scmp.ne.s32.totalorder %s148, %s150
      %p157 = scmp.eq.s32.totalorder %s21, 1
      %p158 = por %p156, %p157
      %p159 = scmp.ne.s32.totalorder %s150, %s151
      %p160 = scmp.eq.s32.totalorder %s21, 0
      %p161 = por %p159, %p160
      %p162 = scmp.ne.s32.totalorder %s150, %s151
      %p163 = scmp.eq.s32.totalorder %s22, 1
      %p164 = por %p162, %p163
      %p166 = scmp.ne.s32.totalorder %s151, %s165
      %p167 = scmp.eq.s32.totalorder %s22, 0
      %p168 = por %p166, %p167
      %s170 = sadd.s32 %s169, 1
      %p173 = scmp.eq.s32.totalorder %s16, 1
      %p174 = scmp.ne.s32.totalorder %s169, %s171
      %p175 = scmp.eq.s32.totalorder %s16, 0
      %p176 = por %p174, %p175
      %p177 = scmp.ne.s32.totalorder %s169, %s171
      %p178 = scmp.eq.s32.totalorder %s21, 1
      %p179 = por %p177, %p178
      %p180 = scmp.ne.s32.totalorder %s171, %s172
      %p181 = scmp.eq.s32.totalorder %s21, 0
      %p182 = por %p180, %p181
      %p183 = scmp.ne.s32.totalorder %s171, %s172
      %p184 = scmp.eq.s32.totalorder %s22, 1
      %p185 = por %p183, %p184
      %p187 = scmp.ne.s32.totalorder %s172, %s186
      %p188 = scmp.eq.s32.totalorder %s22, 0
      %p189 = por %p187, %p188
      %s190 = ssub.s32 %s23, %s35
      %s191 = ssub.s32 %s24, %s31
      %s192 = sor.u32 %s190, %s191
      %p193 = scmp.eq.s32.totalorder %s192, 0
      %s195 = sadd.s32 %s194, 1
      %s196 = scalar_select %p193, %s194, %s195
      %p199 = pneg %p193
      %p200 = scmp.eq.s32.totalorder %s16, 1
      %p201 = por %p199, %p200
      %p202 = scmp.ne.s32.totalorder %s194, %s197
      %p203 = scmp.eq.s32.totalorder %s16, 0
      %p204 = por %p202, %p203
      %p205 = scmp.ne.s32.totalorder %s194, %s197
      %p206 = scmp.eq.s32.totalorder %s21, 1
      %p207 = por %p205, %p206
      %p208 = scmp.ne.s32.totalorder %s197, %s198
      %p209 = scmp.eq.s32.totalorder %s21, 0
      %p210 = por %p208, %p209
      %p211 = scmp.ne.s32.totalorder %s197, %s198
      %p212 = scmp.eq.s32.totalorder %s22, 1
      %p213 = por %p211, %p212
      %p215 = scmp.ne.s32.totalorder %s198, %s214
      %p216 = scmp.eq.s32.totalorder %s22, 0
      %p217 = por %p215, %p216
      %p218 = scmp.le.s32.totalorder 1, %s16
      %p219 = scmp.lt.s32.totalorder %s16, 3
      %p220 = pnand %p218, %p219
      %p221 = pneg %p220
      // Predicated region
      $region9: #{tpu_custom_call.1} parent=5 // pred_check
        _
      $region10: #{tpu_custom_call.1} parent=5 // pred_check_branch
        %223 = sbr.rel (%p220) target = $region12
      $region11: #{tpu_custom_call.1} parent=5 // pred_region
        %s224 = ssub.s32 %s16, 1
        // Predicated region
        $region13: #{tpu_custom_call.1} parent=11 // pred_check
          %p225 = pneg %p77
        $region14: #{tpu_custom_call.1} parent=11 // pred_check_branch
          %227 = sbr.rel (%p225) target = $region16
        $region15: #{tpu_custom_call.1} parent=11 // pred_region
          _
        $region16: #{tpu_custom_call.1} parent=11 // pred_fallthru
          _
        // Predicated region
        $region17: #{tpu_custom_call.1} parent=11 // pred_check
          %p228 = pneg %p98
        $region18: #{tpu_custom_call.1} parent=11 // pred_check_branch
          %230 = sbr.rel (%p228) target = $region20
        $region19: #{tpu_custom_call.1} parent=11 // pred_region
          _
        $region20: #{tpu_custom_call.1} parent=11 // pred_fallthru
          _
        // Predicated region
        $region21: #{tpu_custom_call.1} parent=11 // pred_check
          %p231 = pneg %p119
        $region22: #{tpu_custom_call.1} parent=11 // pred_check_branch
          %233 = sbr.rel (%p231) target = $region24
        $region23: #{tpu_custom_call.1} parent=11 // pred_region
          _
        $region24: #{tpu_custom_call.1} parent=11 // pred_fallthru
          _
        // Predicated region
        $region25: #{tpu_custom_call.1} parent=11 // pred_check
          %p234 = pneg %p140
        $region26: #{tpu_custom_call.1} parent=11 // pred_check_branch
          %236 = sbr.rel (%p234) target = $region28
        $region27: #{tpu_custom_call.1} parent=11 // pred_region
          _
        $region28: #{tpu_custom_call.1} parent=11 // pred_fallthru
          _
        // Predicated region
        $region29: #{tpu_custom_call.1} parent=11 // pred_check
          %p237 = pneg %p161
        $region30: #{tpu_custom_call.1} parent=11 // pred_check_branch
          %239 = sbr.rel (%p237) target = $region32
        $region31: #{tpu_custom_call.1} parent=11 // pred_region
          _
        $region32: #{tpu_custom_call.1} parent=11 // pred_fallthru
          _
        // Predicated region
        $region33: #{tpu_custom_call.1} parent=11 // pred_check
          %p240 = pneg %p182
        $region34: #{tpu_custom_call.1} parent=11 // pred_check_branch
          %242 = sbr.rel (%p240) target = $region36
        $region35: #{tpu_custom_call.1} parent=11 // pred_region
          _
        $region36: #{tpu_custom_call.1} parent=11 // pred_fallthru
          _
      $region12: #{tpu_custom_call.1} parent=5 // pred_fallthru
        _
      %p243 = scmp.lt.s32.totalorder %s16, 2
      // Predicated region
      $region37: #{tpu_custom_call.1} parent=5 // pred_check
        %p244 = pneg %p243
      $region38: #{tpu_custom_call.1} parent=5 // pred_check_branch
        %246 = sbr.rel (%p244) target = $region40
      $region39: #{tpu_custom_call.1} parent=5 // pred_region
        // Predicated region
        $region41: #{tpu_custom_call.1} parent=39 // pred_check
          %p247 = pneg %p50
        $region42: #{tpu_custom_call.1} parent=39 // pred_check_branch
          %249 = sbr.rel (%p247) target = $region44
        $region43: #{tpu_custom_call.1} parent=39 // pred_region
          %p250 = scmp.lt.s32.totalorder %s23, 1
          %s251 = scalar_select %p250, %s23, 1
          %p252 = scmp.lt.s32.totalorder %s24, 0
          %s253 = scalar_select %p252, %s24, 0
          %s254 = sadd.s32 %s253, %s251
          %s255 = smul.addr %s254, 4
          %s256 = scalar_lea.vmem %s0, %s255
        $region44: #{tpu_custom_call.1} parent=39 // pred_fallthru
          _
      $region40: #{tpu_custom_call.1} parent=5 // pred_fallthru
        _
      %p257 = scmp.le.s32.totalorder 1, %s16
      %p258 = scmp.lt.s32.totalorder %s16, 3
      %p259 = pnand %p257, %p258
      %p260 = pneg %p259
      // Predicated region
      $region45: #{tpu_custom_call.1} parent=5 // pred_check
        _
      $region46: #{tpu_custom_call.1} parent=5 // pred_check_branch
        %262 = sbr.rel (%p259) target = $region48
      $region47: #{tpu_custom_call.1} parent=5 // pred_region
        %s263 = ssub.s32 %s16, 1
        %p264 = scmp.lt.s32.totalorder %s25, 1
        %s265 = scalar_select %p264, %s25, 1
        %p266 = scmp.lt.s32.totalorder %s26, 0
        %s267 = scalar_select %p266, %s26, 0
        %s268 = sadd.s32 %s267, %s265
        %s269 = smul.addr %s268, 4
        %s270 = scalar_lea.vmem %s0, %s269
        %p271 = pneg %p56
        %p272 = pneg %p53
        %p273 = pneg %p77
        %p274 = pneg %p74
        %p275 = pneg %p98
        %p276 = pneg %p95
        %p277 = pneg %p119
        %p278 = pneg %p116
        %p279 = pneg %p140
        %p280 = pneg %p137
        %p281 = pneg %p161
        %p282 = pneg %p158
        %p283 = pneg %p182
        %p284 = pneg %p179
        %p285 = pneg %p210
        %p286 = pneg %p207
        %s287 = sand.u32 %s197, 1
        %s288 = scalar_lea.sflag [#allocation5], %s287
        %s289 = sand.u32 %s197, 1
        %s290 = smul.addr %s289, 8
        %s291 = scalar_lea.vmem [#allocation4], %s290
        %p292 = scmp.lt.s32.totalorder %s25, 1
        %s293 = scalar_select %p292, %s25, 1
        %p294 = scmp.lt.s32.totalorder %s26, 0
        %s295 = scalar_select %p294, %s26, 0
        %s296 = sadd.s32 %s295, %s293
        %s297 = smul.addr %s296, 4
        %s298 = scalar_lea.vmem %s0, %s297
        %p299 = scmp.eq.s32.totalorder %s26, 0
        // Predicated region
        $region49: #{tpu_custom_call.1} parent=47 // pred_check
          %p300 = pneg %p299
        $region50: #{tpu_custom_call.1} parent=47 // pred_check_branch
          %302 = sbr.rel (%p300) target = $region52
        $region51: #{tpu_custom_call.1} parent=47 // pred_region
          %vm303 = vcmask 27648
          %304 = vst.msk [vmem:[#allocation2] sm:$0xf] %vm303, 0.0
          %vm305 = vcmask 31744
          %306 = vst.msk [vmem:[#allocation3] sm:$0xff] %vm305, 0.0
        $region52: #{tpu_custom_call.1} parent=47 // pred_fallthru
          _
        %v307 = vld [vmem:[%s298] sm:$0xf]
        %309 = vrot.lane.b32.xlu0 %v307, 4
        %v310 = vpop.permute.xlu0 %309
        %vm312 = vcmask 158752
        %313 = vst.msk [vmem:[#allocation2] sm:$0xf] %vm312, %v310
        %v314 = vld [vmem:[%s1] sm:$0xff]
        %v315 = vld [vmem:[#allocation2] sm:$0xf]
        %v317 = vrot.slane %v315, 4
        %318 = vrot.lane.b32.xlu0 %v317, 126
        %v319 = vpop.permute.xlu0 %318
        %321 = vrot.lane.b32.xlu0 %v315, 124
        %v322 = vpop.permute.xlu0 %321
        %vm323 = vcmask 1043456
        %v324 = vsel %vm323, %v315, %v319
        %v325 = vld [vmem:[%s2] sm:$0xff]
        %327 = vset.pattern.permute.xlu0 0
        %328 = vperm.xlu0 %327, %v325
        %v329 = vpop.permute.xlu0 %328
        %vm331 = vcmask 97280
        %v333 = vsel %vm331, %v314, 0
        %v335 = vsel %vm323, %v322, 0
        %337 = vmatprep.subr.mxu0 0.0
        %338 = vmatpush1.msra.mxu0 %v324
        %339 = vmatprep.subr.mxu0 0.0
        %340 = vmatpush1.msra.mxu0 %v335
        %341 = vmatprep.subr.mxu0 0.0
        %342 = vmatpush1.msra.mxu0 0.0
        %343 = vmatprep.subr.mxu0 0.0
        %344 = vmatpush1.msra.mxu0 0.0
        %345 = vmatprep.subr.mxu0 0.0
        %346 = vmatpush1.msra.mxu0 0.0
        %347 = vmatprep.subr.mxu0 0.0
        %348 = vmatpush1.msra.mxu0 0.0
        %349 = vmatprep.subr.mxu0 0.0
        %350 = vmatpush1.msra.mxu0 0.0
        %351 = vmatprep.subr.mxu0 0.0
        %352 = vmatpush1.msra.mxu0 0.0
        %353 = vmatprep.subr.mxu0 0.0
        %354 = vmatpush1.msra.mxu0 0.0
        %355 = vmatprep.subr.mxu0 0.0
        %356 = vmatpush1.msra.mxu0 0.0
        %357 = vmatprep.subr.mxu0 0.0
        %358 = vmatpush1.msra.mxu0 0.0
        %359 = vmatprep.subr.mxu0 0.0
        %360 = vmatpush1.msra.mxu0 0.0
        %361 = vmatprep.subr.mxu0 0.0
        %362 = vmatpush1.msra.mxu0 0.0
        %363 = vmatprep.subr.mxu0 0.0
        %364 = vmatpush1.msra.mxu0 0.0
        %365 = vmatprep.subr.mxu0 0.0
        %366 = vmatpush1.msra.mxu0 0.0
        %367 = vmatprep.subr.mxu0 0.0
        %368 = vmatpush1.msra.mxu0 0.0
        %369 = vmatprep.subr.mxu0 0.0
        %370 = vmatpush1.msra.mxu0 0.0
        %371 = vmatprep.subr.mxu0 0.0
        %372 = vmatpush1.msra.mxu0 0.0
        %373 = vmatprep.subr.mxu0 0.0
        %374 = vmatpush1.msra.mxu0 0.0
        %375 = vmatprep.subr.mxu0 0.0
        %376 = vmatpush1.msra.mxu0 0.0
        %377 = vmatprep.subr.mxu0 0.0
        %378 = vmatpush1.msra.mxu0 0.0
        %379 = vmatprep.subr.mxu0 0.0
        %380 = vmatpush1.msra.mxu0 0.0
        %381 = vmatprep.subr.mxu0 0.0
        %382 = vmatpush1.msra.mxu0 0.0
        %383 = vmatprep.subr.mxu0 0.0
        %384 = vmatpush1.msra.mxu0 0.0
        %385 = vmatprep.subr.mxu0 0.0
        %386 = vmatpush1.msra.mxu0 0.0
        %387 = vmatprep.subr.mxu0 0.0
        %388 = vmatpush1.msra.mxu0 0.0
        %389 = vmatprep.subr.mxu0 0.0
        %390 = vmatpush1.msra.mxu0 0.0
        %391 = vmatprep.subr.mxu0 0.0
        %392 = vmatpush1.msra.mxu0 0.0
        %393 = vmatprep.subr.mxu0 0.0
        %394 = vmatpush1.msra.mxu0 0.0
        %395 = vmatprep.subr.mxu0 0.0
        %396 = vmatpush1.msra.mxu0 0.0
        %397 = vmatprep.subr.mxu0 0.0
        %398 = vmatpush1.msra.mxu0 0.0
        %399 = vmatprep.subr.mxu0 0.0
        %400 = vmatpush1.msra.mxu0 0.0
        %401 = vmatprep.mubr.f32.mxu0 0.0
        %402 = vmatmul.mubr.f32.gmra.mrb[0].mxu0 %v333
        %v403 = vpop.f32.mrb[0].mxu0
        %v404 = vadd.f32 %v329, %v403
        %v405 = vpop.f32.mrb[0].mxu0
        %406 = vdwg.mxu0
        %v407 = vmax.f32 %v404, 0.0
        %409 = vrot.lane.b32.xlu0 %v407, 4
        %v410 = vpop.permute.xlu0 %409
        %vm412 = vcmask 162848
        %413 = vst.msk [vmem:[#allocation3] sm:$0xff] %vm412, %v410
        %v414 = vld [vmem:[%s3] sm:$0xff]
        %v415 = vld [vmem:[#allocation3] sm:$0xff]
        %417 = vrot.lane.b32.xlu0 %v415, 126
        %v418 = vpop.permute.xlu0 %417
        %420 = vrot.lane.b32.xlu0 %v415, 124
        %v421 = vpop.permute.xlu0 %420
        %v423 = vld [vmem:[%s4] sm:$0xff]
        %425 = vset.pattern.permute.xlu0 0
        %426 = vperm.xlu0 %425, %v423
        %v427 = vpop.permute.xlu0 %426
        %vm429 = vcmask 195584
        %v431 = vsel %vm429, %v414, 0
        %433 = vmatprep.subr.mxu0 0.0
        %434 = vmatpush1.msra.mxu0 %v415
        %435 = vmatprep.subr.mxu0 0.0
        %436 = vmatpush1.msra.mxu0 %v418
        %437 = vmatprep.subr.mxu0 0.0
        %438 = vmatpush1.msra.mxu0 %v421
        %439 = vmatprep.subr.mxu0 0.0
        %440 = vmatpush1.msra.mxu0 0.0
        %441 = vmatprep.subr.mxu0 0.0
        %442 = vmatpush1.msra.mxu0 0.0
        %443 = vmatprep.subr.mxu0 0.0
        %444 = vmatpush1.msra.mxu0 0.0
        %445 = vmatprep.subr.mxu0 0.0
        %446 = vmatpush1.msra.mxu0 0.0
        %447 = vmatprep.subr.mxu0 0.0
        %448 = vmatpush1.msra.mxu0 0.0
        %449 = vmatprep.subr.mxu0 0.0
        %450 = vmatpush1.msra.mxu0 0.0
        %451 = vmatprep.subr.mxu0 0.0
        %452 = vmatpush1.msra.mxu0 0.0
        %453 = vmatprep.subr.mxu0 0.0
        %454 = vmatpush1.msra.mxu0 0.0
        %455 = vmatprep.subr.mxu0 0.0
        %456 = vmatpush1.msra.mxu0 0.0
        %457 = vmatprep.subr.mxu0 0.0
        %458 = vmatpush1.msra.mxu0 0.0
        %459 = vmatprep.subr.mxu0 0.0
        %460 = vmatpush1.msra.mxu0 0.0
        %461 = vmatprep.subr.mxu0 0.0
        %462 = vmatpush1.msra.mxu0 0.0
        %463 = vmatprep.subr.mxu0 0.0
        %464 = vmatpush1.msra.mxu0 0.0
        %465 = vmatprep.subr.mxu0 0.0
        %466 = vmatpush1.msra.mxu0 0.0
        %467 = vmatprep.subr.mxu0 0.0
        %468 = vmatpush1.msra.mxu0 0.0
        %469 = vmatprep.subr.mxu0 0.0
        %470 = vmatpush1.msra.mxu0 0.0
        %471 = vmatprep.subr.mxu0 0.0
        %472 = vmatpush1.msra.mxu0 0.0
        %473 = vmatprep.subr.mxu0 0.0
        %474 = vmatpush1.msra.mxu0 0.0
        %475 = vmatprep.subr.mxu0 0.0
        %476 = vmatpush1.msra.mxu0 0.0
        %477 = vmatprep.subr.mxu0 0.0
        %478 = vmatpush1.msra.mxu0 0.0
        %479 = vmatprep.subr.mxu0 0.0
        %480 = vmatpush1.msra.mxu0 0.0
        %481 = vmatprep.subr.mxu0 0.0
        %482 = vmatpush1.msra.mxu0 0.0
        %483 = vmatprep.subr.mxu0 0.0
        %484 = vmatpush1.msra.mxu0 0.0
        %485 = vmatprep.subr.mxu0 0.0
        %486 = vmatpush1.msra.mxu0 0.0
        %487 = vmatprep.subr.mxu0 0.0
        %488 = vmatpush1.msra.mxu0 0.0
        %489 = vmatprep.subr.mxu0 0.0
        %490 = vmatpush1.msra.mxu0 0.0
        %491 = vmatprep.subr.mxu0 0.0
        %492 = vmatpush1.msra.mxu0 0.0
        %493 = vmatprep.subr.mxu0 0.0
        %494 = vmatpush1.msra.mxu0 0.0
        %495 = vmatprep.subr.mxu0 0.0
        %496 = vmatpush1.msra.mxu0 0.0
        %497 = vmatprep.mubr.f32.mxu0 0.0
        %498 = vmatmul.mubr.f32.gmra.mrb[0].mxu0 %v431
        %v499 = vpop.f32.mrb[0].mxu0
        %v500 = vadd.f32 %v427, %v499
        %v501 = vpop.f32.mrb[0].mxu0
        %502 = vdwg.mxu0
        %v503 = vmax.f32 %v500, 0.0
        %v504 = vld [vmem:[%s5] sm:$0xff]
        %v505 = vld [vmem:[%s6] sm:$0xff]
        %507 = vset.pattern.permute.xlu0 0
        %508 = vperm.xlu0 %507, %v505
        %v509 = vpop.permute.xlu0 %508
        %vm511 = vcmask 31744
        %v513 = vsel %vm511, %v504, 0
        %v515 = vsel %vm323, %v307, 0
        %517 = vmatprep.subr.mxu0 0.0
        %518 = vmatpush1.msra.mxu0 %v515
        %519 = vmatprep.subr.mxu0 0.0
        %520 = vmatpush1.msra.mxu0 0.0
        %521 = vmatprep.subr.mxu0 0.0
        %522 = vmatpush1.msra.mxu0 0.0
        %523 = vmatprep.subr.mxu0 0.0
        %524 = vmatpush1.msra.mxu0 0.0
        %525 = vmatprep.subr.mxu0 0.0
        %526 = vmatpush1.msra.mxu0 0.0
        %527 = vmatprep.subr.mxu0 0.0
        %528 = vmatpush1.msra.mxu0 0.0
        %529 = vmatprep.subr.mxu0 0.0
        %530 = vmatpush1.msra.mxu0 0.0
        %531 = vmatprep.subr.mxu0 0.0
        %532 = vmatpush1.msra.mxu0 0.0
        %533 = vmatprep.subr.mxu0 0.0
        %534 = vmatpush1.msra.mxu0 0.0
        %535 = vmatprep.subr.mxu0 0.0
        %536 = vmatpush1.msra.mxu0 0.0
        %537 = vmatprep.subr.mxu0 0.0
        %538 = vmatpush1.msra.mxu0 0.0
        %539 = vmatprep.subr.mxu0 0.0
        %540 = vmatpush1.msra.mxu0 0.0
        %541 = vmatprep.subr.mxu0 0.0
        %542 = vmatpush1.msra.mxu0 0.0
        %543 = vmatprep.subr.mxu0 0.0
        %544 = vmatpush1.msra.mxu0 0.0
        %545 = vmatprep.subr.mxu0 0.0
        %546 = vmatpush1.msra.mxu0 0.0
        %547 = vmatprep.subr.mxu0 0.0
        %548 = vmatpush1.msra.mxu0 0.0
        %549 = vmatprep.subr.mxu0 0.0
        %550 = vmatpush1.msra.mxu0 0.0
        %551 = vmatprep.subr.mxu0 0.0
        %552 = vmatpush1.msra.mxu0 0.0
        %553 = vmatprep.subr.mxu0 0.0
        %554 = vmatpush1.msra.mxu0 0.0
        %555 = vmatprep.subr.mxu0 0.0
        %556 = vmatpush1.msra.mxu0 0.0
        %557 = vmatprep.subr.mxu0 0.0
        %558 = vmatpush1.msra.mxu0 0.0
        %559 = vmatprep.subr.mxu0 0.0
        %560 = vmatpush1.msra.mxu0 0.0
        %561 = vmatprep.subr.mxu0 0.0
        %562 = vmatpush1.msra.mxu0 0.0
        %563 = vmatprep.subr.mxu0 0.0
        %564 = vmatpush1.msra.mxu0 0.0
        %565 = vmatprep.subr.mxu0 0.0
        %566 = vmatpush1.msra.mxu0 0.0
        %567 = vmatprep.subr.mxu0 0.0
        %568 = vmatpush1.msra.mxu0 0.0
        %569 = vmatprep.subr.mxu0 0.0
        %570 = vmatpush1.msra.mxu0 0.0
        %571 = vmatprep.subr.mxu0 0.0
        %572 = vmatpush1.msra.mxu0 0.0
        %573 = vmatprep.subr.mxu0 0.0
        %574 = vmatpush1.msra.mxu0 0.0
        %575 = vmatprep.subr.mxu0 0.0
        %576 = vmatpush1.msra.mxu0 0.0
        %577 = vmatprep.subr.mxu0 0.0
        %578 = vmatpush1.msra.mxu0 0.0
        %579 = vmatprep.subr.mxu0 0.0
        %580 = vmatpush1.msra.mxu0 0.0
        %581 = vmatprep.mubr.f32.mxu0 0.0
        %582 = vmatmul.mubr.f32.gmra.mrb[0].mxu0 %v513
        %v583 = vpop.f32.mrb[0].mxu0
        %v584 = vadd.f32 %v509, %v583
        %v585 = vpop.f32.mrb[0].mxu0
        %586 = vdwg.mxu0
        %v587 = vadd.f32 %v503, %v584
        %v588 = vmax.f32 %v587, 0.0
        %vm589 = vcmask 130048
        %590 = vst.msk [vmem:[%s291] sm:$0xff] %vm589, %v588
        %s591 = sand.u32 %s197, 1
        %s592 = scalar_lea.sflag [#allocation5], %s591
        %s593 = sand.u32 %s197, 1
        %s594 = smul.addr %s593, 8
        %s595 = scalar_lea.vmem [#allocation4], %s594
        // Predicated region
        $region53: #{tpu_custom_call.1} parent=47 // pred_check
          %p596 = pneg %p207
        $region54: #{tpu_custom_call.1} parent=47 // pred_check_branch
          %598 = sbr.rel (%p596) target = $region56
        $region55: #{tpu_custom_call.1} parent=47 // pred_region
          %s600 = ssub.s32 128, 128
          %601 = vsyncadd %s592, %s600
          %s602 = sadd.s32 %s26, %s25
          %s603 = smul.addr %s602, 128
          %s604 = scalar_lea.hbm %s7, %s603
          %s606 = sshll.u32 %s595, 4
          %s607 = int_to_ptr.vmem [resolvable:$true] %s606
          %609 = dma.vmem_to_hbm [thread:$0]  %s607, 128, %s604, %s592
        $region56: #{tpu_custom_call.1} parent=47 // pred_fallthru
          _
      $region48: #{tpu_custom_call.1} parent=5 // pred_fallthru
        _
      %p610 = scmp.le.s32.totalorder 2, %s16
      // Predicated region
      $region57: #{tpu_custom_call.1} parent=5 // pred_check
        %p611 = pneg %p610
      $region58: #{tpu_custom_call.1} parent=5 // pred_check_branch
        %613 = sbr.rel (%p611) target = $region60
      $region59: #{tpu_custom_call.1} parent=5 // pred_region
        %s614 = ssub.s32 %s16, 2
        // Predicated region
        $region61: #{tpu_custom_call.1} parent=59 // pred_check
          %p615 = pneg %p213
        $region62: #{tpu_custom_call.1} parent=59 // pred_check_branch
          %617 = sbr.rel (%p615) target = $region64
        $region63: #{tpu_custom_call.1} parent=59 // pred_region
          %s618 = sand.u32 %s198, 1
          %s619 = scalar_lea.sflag [#allocation5], %s618
          %s620 = sand.u32 %s198, 1
          %s621 = smul.addr %s620, 8
          %s622 = scalar_lea.vmem [#allocation4], %s621
          %623 = dma.done %s619, 128
        $region64: #{tpu_custom_call.1} parent=59 // pred_fallthru
          _
      $region60: #{tpu_custom_call.1} parent=5 // pred_fallthru
        _
    $region6: #{tpu_custom_call.1} parent=1 // loop_footer
      %s20 = sadd.s32 1, %s16
    $region7: #{tpu_custom_call.1} parent=1 // loop_footer_branch
      %15 = sbr.rel target = $region3
    $region8: #{tpu_custom_call.1} parent=1 // loop_exit
      _
    %624 = vsyncpa [#allocation5], 1
    %s625 = scalar_lea.sflag [#allocation5], 1
    %626 = vsyncpa %s625, 1

</llo_original>
